<compile_context>
chip_gen: v6e
topology: v6e:2x2x1
jax: 0.10.0
libtpu: 0.0.40
codegen_flags: <defaults>
</compile_context>

<pallas_src>
import functools

import jax
import jax.numpy as jnp
from jax.experimental import pallas as pl
from jax.experimental.pallas import tpu as pltpu

n_embd = 32          # embedding dim (C)
dropout_ratio = 0.1  # unused at inference


def _ffn_kernel(x_ref, w1_ref, b1_ref, w2_ref, b2_ref, o_ref):
    # Packed layout: each row holds `p` tokens side by side (lane-dense).
    #   x_ref : (tm/p, p*C)   w1_ref: (p*C, p*H)   b1_ref: (1, p*H) f32
    #   w2_ref: (p*H, p*C)    b2_ref: (1, p*C) f32   o_ref : (tm/p, p*C)
    h = jnp.dot(x_ref[...], w1_ref[...], preferred_element_type=jnp.float32)
    h = jnp.maximum(h + b1_ref[...], 0.0)            # fused bias-add + ReLU (one VPU pass)
    y = jnp.dot(h.astype(w2_ref.dtype), w2_ref[...],
                preferred_element_type=jnp.float32)
    # Dropout: identity at inference.
    o_ref[...] = (y + b2_ref[...]).astype(o_ref.dtype)


def _round_up(a, b):
    return ((a + b - 1) // b) * b


def _pack_factor(c):
    # p tokens per packed row -> row width is a full 128-lane vreg.
    return 128 // c if (c < 128 and 128 % c == 0) else 1


def pack_ffn_params(w1, b1, w2, b2, *, weight_dtype=None):
    """Build block-diagonal packed weights ONCE (outside the per-step call).

    w1: (C, H), b1: (H,), w2: (H, C), b2: (C,).
    Weights are packed (and optionally cast, e.g. to bf16); biases stay f32
    (they add onto the f32 accumulator inside the kernel).
    """
    C, H = w1.shape
    p = _pack_factor(C)
    wd = jnp.dtype(weight_dtype) if weight_dtype is not None else w1.dtype
    eye = jnp.eye(p, dtype=wd)
    w1_pk = jnp.kron(eye, w1.astype(wd))                              # (p*C, p*H)
    w2_pk = jnp.kron(eye, w2.astype(wd))                              # (p*H, p*C)
    b1_pk = jnp.tile(b1.reshape(1, H).astype(jnp.float32), (1, p))    # (1, p*H)
    b2_pk = jnp.tile(b2.reshape(1, C).astype(jnp.float32), (1, p))    # (1, p*C)
    return w1_pk, b1_pk, w2_pk, b2_pk


@functools.partial(jax.jit, static_argnames=("tm",))
def feed_forward(x, w1_pk, b1_pk, w2_pk, b2_pk, *, tm=None):
    """x: (B, T, C) -> (B, T, C). Fused Linear->ReLU->Linear (eval-mode dropout).

    x dtype should match the packed-weight dtype (e.g. both bf16) so operands
    feed the MXU directly with no wrapper or in-kernel relayout casts.
    """
    B, T, C = x.shape
    pC, pH = w1_pk.shape
    p = _pack_factor(C)
    assert pC == p * C and w2_pk.shape == (pH, pC)
    H = pH // p
    M = B * T

    ROW_ALIGN = 8 * p          # keeps packed blocks (8, 128)-aligned
    TM_TARGET = 8192           # rows/step at large M (amortizes ~0.35us/step)
    TM_MIN_SPLIT = 1024        # never shrink a step below this just to add steps
    # v7x has 2 TensorCores; the "parallel" grid axis is sharded across them.

    if tm is None:
        steps = pl.cdiv(M, TM_TARGET)
        if M >= 4 * TM_MIN_SPLIT:
            steps = max(steps, 4)          # >= 2 pipelined steps per TC on v7x
        elif M >= 2 * TM_MIN_SPLIT:
            steps = max(steps, 2)
        if steps >= 4 and steps % 2:
            steps += 1                     # even step count balances both TCs
        tm = _round_up(max(pl.cdiv(M, steps), 1), ROW_ALIGN)
    assert tm % ROW_ALIGN == 0, "tm must be a multiple of 8 * pack"

    grid_m = pl.cdiv(M, tm)
    M_pad = grid_m * tm                    # padding spread over steps (<= tm-1 rows)

    x2d = x.reshape(M, C)
    if M_pad != M:
        x2d = jnp.pad(x2d, ((0, M_pad - M), (0, 0)))
    x_pk = x2d.reshape(M_pad // p, p * C)  # free row-major reshape

    rows = tm // p
    x_bytes = jnp.dtype(x.dtype).itemsize
    w_bytes = jnp.dtype(w1_pk.dtype).itemsize

    # VMEM footprint: double-buffered x/out tiles + (double-buffered) resident
    # weights/biases + f32 intermediates (h, y) inside the body.
    vmem_bytes = (4 * tm * C * x_bytes          # x + out tiles, 2 buffers each
                  + 4 * pC * pH * w_bytes       # W1 + W2, 2 buffers each
                  + 4 * (pH + pC) * 4           # f32 biases, 2 buffers each
                  + tm * (H + C) * 4)           # f32 h + y temporaries
    vmem_limit = int(min(64 * 2**20, max(32 * 2**20, 2 * vmem_bytes)))

    cost = pl.CostEstimate(
        flops=4 * M_pad * p * C * H,                        # two packed matmuls
        transcendentals=0,
        bytes_accessed=2 * M_pad * C * x_bytes              # x in + y out
        + 2 * pC * pH * w_bytes                             # resident weights
        + (pH + pC) * 4,                                    # biases (f32)
    )

    out_pk = pl.pallas_call(
        _ffn_kernel,
        out_shape=jax.ShapeDtypeStruct((M_pad // p, p * C), x.dtype),
        grid_spec=pltpu.PrefetchScalarGridSpec(
            num_scalar_prefetch=0,
            grid=(grid_m,),
            in_specs=[
                pl.BlockSpec((rows, p * C), lambda i: (i, 0)),    # x tile (packed)
                pl.BlockSpec((p * C, p * H), lambda i: (0, 0)),   # W1 (resident)
                pl.BlockSpec((1, p * H), lambda i: (0, 0)),       # b1 (f32)
                pl.BlockSpec((p * H, p * C), lambda i: (0, 0)),   # W2 (resident)
                pl.BlockSpec((1, p * C), lambda i: (0, 0)),       # b2 (f32)
            ],
            out_specs=pl.BlockSpec((rows, p * C), lambda i: (i, 0)),
        ),
        compiler_params=pltpu.CompilerParams(
            dimension_semantics=("parallel",),
            vmem_limit_bytes=vmem_limit,
        ),
        cost_estimate=cost,
    )(x_pk, w1_pk, b1_pk, w2_pk, b2_pk)

    out = out_pk.reshape(M_pad, C)[:M]                      # drop padded tokens
    return out.reshape(B, T, C)


def init_params(key, c, h, dtype=jnp.float32):
    """Deterministic PyTorch-Linear-style init: U(-1/sqrt(fan_in), 1/sqrt(fan_in))."""
    k1, k2, k3, k4 = jax.random.split(key, 4)
    lim1 = 1.0 / (c ** 0.5)
    lim2 = 1.0 / (h ** 0.5)
    w1 = jax.random.uniform(k1, (c, h), dtype, -lim1, lim1)
    b1 = jax.random.uniform(k2, (h,), dtype, -lim1, lim1)
    w2 = jax.random.uniform(k3, (h, c), dtype, -lim2, lim2)
    b2 = jax.random.uniform(k4, (c,), dtype, -lim2, lim2)
    return w1, b1, w2, b2


if __name__ == "__main__":
    key = jax.random.PRNGKey(0)
    kx, kx2, kp = jax.random.split(key, 3)

    C = n_embd
    H = 4 * n_embd
    w1, b1, w2, b2 = init_params(kp, C, H)

    # --- Test 1: f32 path, small shape consistent with the module:
    # (B, T, C) = (2, 8, 32). Validates the kron/block-diagonal packing exactly.
    pk_f32 = pack_ffn_params(w1, b1, w2, b2)                 # f32 packed weights
    B, T = 2, 8
    x = jax.random.normal(kx, (B, T, C), jnp.float32)
    y = jax.block_until_ready(feed_forward(x, *pk_f32))
    ref = jnp.maximum(x @ w1 + b1, 0.0) @ w2 + b2
    assert y.shape == (B, T, C)
    assert jnp.allclose(y, ref, atol=1e-4, rtol=1e-4), "mismatch vs reference (f32)"

    # --- Test 2: bf16 I/O + bf16 packed weights (recommended production dtype),
    # with an explicit small tile to exercise the multi-step grid + padding path
    # (M = 1200 -> 10 steps of 128 rows, 80 padded rows sliced off).
    pk_bf16 = pack_ffn_params(w1, b1, w2, b2, weight_dtype=jnp.bfloat16)
    B2, T2 = 4, 300
    x2 = jax.random.normal(kx2, (B2, T2, C), jnp.float32)
    x2_bf16 = x2.astype(jnp.bfloat16)
    y2 = jax.block_until_ready(feed_forward(x2_bf16, *pk_bf16, tm=128))
    ref2 = jnp.maximum(x2_bf16.astype(jnp.float32) @ w1 + b1, 0.0) @ w2 + b2
    assert y2.shape == (B2, T2, C)
    assert y2.dtype == jnp.bfloat16
    assert jnp.allclose(y2.astype(jnp.float32), ref2, atol=3e-2, rtol=3e-2), \
        "mismatch vs reference (bf16)"

    print("KERNEL_OK")
</pallas_src>

<mosaic_0001>
module attributes {stable_mosaic.version = 11 : i64} {
  func.func @_ffn_kernel(%arg0: i32, %arg1: memref<8x128xf32, #tpu.memory_space<vmem>>, %arg2: memref<128x512xf32, #tpu.memory_space<vmem>>, %arg3: memref<1x512xf32, #tpu.memory_space<vmem>>, %arg4: memref<512x128xf32, #tpu.memory_space<vmem>>, %arg5: memref<1x128xf32, #tpu.memory_space<vmem>>, %arg6: memref<8x128xf32, #tpu.memory_space<vmem>>) attributes {dimension_semantics = [#tpu.dimension_semantics<parallel>], iteration_bounds = array<i64: 1>, scalar_prefetch = 0 : i64, scratch_operands = 0 : i64, tpu.core_type = #tpu.core_type<tc>, window_params = [{transform_indices = @transform_0, window_bounds = array<i64: 8, 128>}, {pipeline_mode = #tpu.pipeline_mode<synchronous>, transform_indices = @transform_1, window_bounds = array<i64: 128, 512>}, {pipeline_mode = #tpu.pipeline_mode<synchronous>, transform_indices = @transform_2, window_bounds = array<i64: 1, 512>}, {pipeline_mode = #tpu.pipeline_mode<synchronous>, transform_indices = @transform_3, window_bounds = array<i64: 512, 128>}, {pipeline_mode = #tpu.pipeline_mode<synchronous>, transform_indices = @transform_4, window_bounds = array<i64: 1, 128>}, {transform_indices = @transform_5, window_bounds = array<i64: 8, 128>}]} {
    %c0 = arith.constant 0 : index
    %c0_0 = arith.constant 0 : index
    %0 = vector.load %arg1[%c0, %c0_0] : memref<8x128xf32, #tpu.memory_space<vmem>>, vector<8x128xf32>
    %c0_1 = arith.constant 0 : index
    %c0_2 = arith.constant 0 : index
    %1 = vector.load %arg2[%c0_1, %c0_2] : memref<128x512xf32, #tpu.memory_space<vmem>>, vector<128x512xf32>
    %cst = arith.constant dense<0.000000e+00> : vector<8x512xf32>
    %2 = tpu.matmul %0, %1, %cst {dimension_numbers = #tpu.dot_dimension_numbers<[1], [0], [0], [1], [0, 0, 1, 1], [], []>} : vector<8x128xf32>, vector<128x512xf32>, vector<8x512xf32> -> vector<8x512xf32>
    %c0_3 = arith.constant 0 : index
    %c0_4 = arith.constant 0 : index
    %3 = vector.load %arg3[%c0_3, %c0_4] : memref<1x512xf32, #tpu.memory_space<vmem>>, vector<1x512xf32>
    %4 = vector.broadcast %3 : vector<1x512xf32> to vector<8x512xf32>
    %5 = arith.addf %2, %4 : vector<8x512xf32>
    %cst_5 = arith.constant 0.000000e+00 : f32
    %6 = vector.broadcast %cst_5 : f32 to vector<8x512xf32>
    %7 = arith.maximumf %5, %6 : vector<8x512xf32>
    %c0_6 = arith.constant 0 : index
    %c0_7 = arith.constant 0 : index
    %8 = vector.load %arg4[%c0_6, %c0_7] : memref<512x128xf32, #tpu.memory_space<vmem>>, vector<512x128xf32>
    %cst_8 = arith.constant dense<0.000000e+00> : vector<8x128xf32>
    %9 = tpu.matmul %7, %8, %cst_8 {dimension_numbers = #tpu.dot_dimension_numbers<[1], [0], [0], [1], [0, 0, 1, 1], [], []>} : vector<8x512xf32>, vector<512x128xf32>, vector<8x128xf32> -> vector<8x128xf32>
    %c0_9 = arith.constant 0 : index
    %c0_10 = arith.constant 0 : index
    %10 = vector.load %arg5[%c0_9, %c0_10] : memref<1x128xf32, #tpu.memory_space<vmem>>, vector<1x128xf32>
    %11 = vector.broadcast %10 : vector<1x128xf32> to vector<8x128xf32>
    %12 = arith.addf %9, %11 : vector<8x128xf32>
    %c0_11 = arith.constant 0 : index
    %c0_12 = arith.constant 0 : index
    %13 = vector.load %arg6[%c0_11, %c0_12] : memref<8x128xf32, #tpu.memory_space<vmem>>, vector<8x128xf32>
    tpu.vector_store %arg6[%c0_11, %c0_12], %12 {strides = array<i32>} : memref<8x128xf32, #tpu.memory_space<vmem>>, vector<8x128xf32>,
    return
  }
  func.func @transform_0(%arg0: i32) -> (i32, i32) {
    %c0_i32 = arith.constant 0 : i32
    %c0_i32_0 = arith.constant 0 : i32
    return %arg0, %c0_i32 : i32, i32
  }
  func.func @transform_1(%arg0: i32) -> (i32, i32) {
    %c0_i32 = arith.constant 0 : i32
    %c0_i32_0 = arith.constant 0 : i32
    %c0_i32_1 = arith.constant 0 : i32
    return %c0_i32, %c0_i32_0 : i32, i32
  }
  func.func @transform_2(%arg0: i32) -> (i32, i32) {
    %c0_i32 = arith.constant 0 : i32
    %c0_i32_0 = arith.constant 0 : i32
    %c0_i32_1 = arith.constant 0 : i32
    return %c0_i32, %c0_i32_0 : i32, i32
  }
  func.func @transform_3(%arg0: i32) -> (i32, i32) {
    %c0_i32 = arith.constant 0 : i32
    %c0_i32_0 = arith.constant 0 : i32
    %c0_i32_1 = arith.constant 0 : i32
    return %c0_i32, %c0_i32_0 : i32, i32
  }
  func.func @transform_4(%arg0: i32) -> (i32, i32) {
    %c0_i32 = arith.constant 0 : i32
    %c0_i32_0 = arith.constant 0 : i32
    %c0_i32_1 = arith.constant 0 : i32
    return %c0_i32, %c0_i32_0 : i32, i32
  }
  func.func @transform_5(%arg0: i32) -> (i32, i32) {
    %c0_i32 = arith.constant 0 : i32
    %c0_i32_0 = arith.constant 0 : i32
    return %arg0, %c0_i32 : i32, i32
  }
}

</mosaic_0001>

<llo_original>
// kernel: feed_forward.1
$region0: #{feed_forward.1}
  #allocation0 [shape = 'u32[]', space=smem, size = 0x4, offset = 0x4, fixed_abs, tag = 'smem constant byte address 0x4 - core index']
  #allocation1 [shape = 'u32[144,128]{1,0:T(1,128)}', space=vmem, size = 0x12000, scoped, tag = 'internal scratch']
  %s0 = inlined_call_operand.vmem [shape: f32[8,128], index: 0, kind: input, shape index: {}]
  %s1 = inlined_call_operand.hbm [shape: f32[128,512], index: 1, kind: input, shape index: {}]
  %s2 = inlined_call_operand.vmem [shape: f32[1,512], index: 2, kind: input, shape index: {}]
  %s3 = inlined_call_operand.hbm [shape: f32[512,128], index: 3, kind: input, shape index: {}]
  %s4 = inlined_call_operand.vmem [shape: f32[1,128], index: 4, kind: input, shape index: {}]
  %s5 = inlined_call_operand.vmem [shape: f32[8,128], index: 5, kind: output, shape index: {}]
  %s6 = sld [smem:[#allocation0]]
  $region38: #{feed_forward.1} parent=0
    _
  %s8 = ssub.s32 1, %s6
  %s9 = scalar_select 0, %s8, %s6
  $region1: #{feed_forward.1} parent=0
    #allocation2 [shape = 'u8[262144]{0}', space=vmem, size = 0x40000, scoped, tag = 'input window, operand 1, single buffered']
    #allocation3 [shape = 's32[1]{0}', space=sflag, size = 0x4, scoped, tag = 'scoped memory for feed_forward.1']
    #allocation4 [shape = 'u8[262144]{0}', space=vmem, size = 0x40000, scoped, tag = 'input window, operand 3, single buffered']
    #allocation5 [shape = 's32[1]{0}', space=sflag, size = 0x4, scoped, tag = 'scoped memory for feed_forward.1']
    %10 = vsyncpa [#allocation3], 0
    %11 = vsyncpa [#allocation5], 0
    // Predicated region
    $region2: #{feed_forward.1} parent=1 // pred_check
      _
    $region3: #{feed_forward.1} parent=1 // pred_check_branch
      %13 = sbr.rel (0) target = $region5
    $region4: #{feed_forward.1} parent=1 // pred_region
      _
    $region5: #{feed_forward.1} parent=1 // pred_fallthru
      _
    // Predicated region
    $region6: #{feed_forward.1} parent=1 // pred_check
      _
    $region7: #{feed_forward.1} parent=1 // pred_check_branch
      %15 = sbr.rel (0) target = $region9
    $region8: #{feed_forward.1} parent=1 // pred_region
      %s17 = ssub.s32 8192, 8192
      %18 = vsyncadd [#allocation3], %s17
      %s19 = sshll.u32 [#allocation2], 4
      %s20 = int_to_ptr.vmem [resolvable:$true] %s19
      %25 = dma.hbm_to_vmem [thread:$0]  %s1, 8192, %s20, [#allocation3], 512, 512, 32
    $region9: #{feed_forward.1} parent=1 // pred_fallthru
      _
    // Predicated region
    $region10: #{feed_forward.1} parent=1 // pred_check
      _
    $region11: #{feed_forward.1} parent=1 // pred_check_branch
      %27 = sbr.rel (0) target = $region13
    $region12: #{feed_forward.1} parent=1 // pred_region
      _
    $region13: #{feed_forward.1} parent=1 // pred_fallthru
      _
    // Predicated region
    $region14: #{feed_forward.1} parent=1 // pred_check
      _
    $region15: #{feed_forward.1} parent=1 // pred_check_branch
      %29 = sbr.rel (0) target = $region17
    $region16: #{feed_forward.1} parent=1 // pred_region
      %s31 = ssub.s32 8192, 8192
      %32 = vsyncadd [#allocation5], %s31
      %s33 = sshll.u32 [#allocation4], 4
      %s34 = int_to_ptr.vmem [resolvable:$true] %s33
      %39 = dma.hbm_to_vmem [thread:$0]  %s3, 8192, %s34, [#allocation5], 128, 128, 8
    $region17: #{feed_forward.1} parent=1 // pred_fallthru
      _
    // Predicated region
    $region18: #{feed_forward.1} parent=1 // pred_check
      _
    $region19: #{feed_forward.1} parent=1 // pred_check_branch
      %41 = sbr.rel (0) target = $region21
    $region20: #{feed_forward.1} parent=1 // pred_region
      _
    $region21: #{feed_forward.1} parent=1 // pred_fallthru
      _
    // Predicated region
    $region22: #{feed_forward.1} parent=1 // pred_check
      _
    $region23: #{feed_forward.1} parent=1 // pred_check_branch
      %43 = sbr.rel (0) target = $region25
    $region24: #{feed_forward.1} parent=1 // pred_region
      %44 = dma.done [#allocation3], 8192
    $region25: #{feed_forward.1} parent=1 // pred_fallthru
      _
    // Predicated region
    $region26: #{feed_forward.1} parent=1 // pred_check
      _
    $region27: #{feed_forward.1} parent=1 // pred_check_branch
      %46 = sbr.rel (0) target = $region29
    $region28: #{feed_forward.1} parent=1 // pred_region
      %47 = dma.done [#allocation5], 8192
    $region29: #{feed_forward.1} parent=1 // pred_fallthru
      _
    %v48 = vld [vmem:[%s0] sm:$0xff]
    %v49 = vld [vmem:[#allocation2] sm:$0xff]
    %v50 = vld [vmem:[#allocation2 + $0x8] sm:$0xff]
    %v51 = vld [vmem:[#allocation2 + $0x10] sm:$0xff]
    %v52 = vld [vmem:[#allocation2 + $0x18] sm:$0xff]
    %v53 = vld [vmem:[#allocation2 + $0x20] sm:$0xff]
    %v54 = vld [vmem:[#allocation2 + $0x28] sm:$0xff]
    %v55 = vld [vmem:[#allocation2 + $0x30] sm:$0xff]
    %v56 = vld [vmem:[#allocation2 + $0x38] sm:$0xff]
    %v57 = vld [vmem:[#allocation2 + $0x40] sm:$0xff]
    %v58 = vld [vmem:[#allocation2 + $0x48] sm:$0xff]
    %v59 = vld [vmem:[#allocation2 + $0x50] sm:$0xff]
    %v60 = vld [vmem:[#allocation2 + $0x58] sm:$0xff]
    %v61 = vld [vmem:[#allocation2 + $0x60] sm:$0xff]
    %v62 = vld [vmem:[#allocation2 + $0x68] sm:$0xff]
    %v63 = vld [vmem:[#allocation2 + $0x70] sm:$0xff]
    %v64 = vld [vmem:[#allocation2 + $0x78] sm:$0xff]
    %v65 = vld [vmem:[#allocation2 + $0x80] sm:$0xff]
    %v66 = vld [vmem:[#allocation2 + $0x88] sm:$0xff]
    %v67 = vld [vmem:[#allocation2 + $0x90] sm:$0xff]
    %v68 = vld [vmem:[#allocation2 + $0x98] sm:$0xff]
    %v69 = vld [vmem:[#allocation2 + $0xa0] sm:$0xff]
    %v70 = vld [vmem:[#allocation2 + $0xa8] sm:$0xff]
    %v71 = vld [vmem:[#allocation2 + $0xb0] sm:$0xff]
    %v72 = vld [vmem:[#allocation2 + $0xb8] sm:$0xff]
    %v73 = vld [vmem:[#allocation2 + $0xc0] sm:$0xff]
    %v74 = vld [vmem:[#allocation2 + $0xc8] sm:$0xff]
    %v75 = vld [vmem:[#allocation2 + $0xd0] sm:$0xff]
    %v76 = vld [vmem:[#allocation2 + $0xd8] sm:$0xff]
    %v77 = vld [vmem:[#allocation2 + $0xe0] sm:$0xff]
    %v78 = vld [vmem:[#allocation2 + $0xe8] sm:$0xff]
    %v79 = vld [vmem:[#allocation2 + $0xf0] sm:$0xff]
    %v80 = vld [vmem:[#allocation2 + $0xf8] sm:$0xff]
    %v81 = vld [vmem:[#allocation2 + $0x100] sm:$0xff]
    %v82 = vld [vmem:[#allocation2 + $0x108] sm:$0xff]
    %v83 = vld [vmem:[#allocation2 + $0x110] sm:$0xff]
    %v84 = vld [vmem:[#allocation2 + $0x118] sm:$0xff]
    %v85 = vld [vmem:[#allocation2 + $0x120] sm:$0xff]
    %v86 = vld [vmem:[#allocation2 + $0x128] sm:$0xff]
    %v87 = vld [vmem:[#allocation2 + $0x130] sm:$0xff]
    %v88 = vld [vmem:[#allocation2 + $0x138] sm:$0xff]
    %v89 = vld [vmem:[#allocation2 + $0x140] sm:$0xff]
    %v90 = vld [vmem:[#allocation2 + $0x148] sm:$0xff]
    %v91 = vld [vmem:[#allocation2 + $0x150] sm:$0xff]
    %v92 = vld [vmem:[#allocation2 + $0x158] sm:$0xff]
    %v93 = vld [vmem:[#allocation2 + $0x160] sm:$0xff]
    %v94 = vld [vmem:[#allocation2 + $0x168] sm:$0xff]
    %v95 = vld [vmem:[#allocation2 + $0x170] sm:$0xff]
    %v96 = vld [vmem:[#allocation2 + $0x178] sm:$0xff]
    %v97 = vld [vmem:[#allocation2 + $0x180] sm:$0xff]
    %v98 = vld [vmem:[#allocation2 + $0x188] sm:$0xff]
    %v99 = vld [vmem:[#allocation2 + $0x190] sm:$0xff]
    %v100 = vld [vmem:[#allocation2 + $0x198] sm:$0xff]
    %v101 = vld [vmem:[#allocation2 + $0x1a0] sm:$0xff]
    %v102 = vld [vmem:[#allocation2 + $0x1a8] sm:$0xff]
    %v103 = vld [vmem:[#allocation2 + $0x1b0] sm:$0xff]
    %v104 = vld [vmem:[#allocation2 + $0x1b8] sm:$0xff]
    %v105 = vld [vmem:[#allocation2 + $0x1c0] sm:$0xff]
    %v106 = vld [vmem:[#allocation2 + $0x1c8] sm:$0xff]
    %v107 = vld [vmem:[#allocation2 + $0x1d0] sm:$0xff]
    %v108 = vld [vmem:[#allocation2 + $0x1d8] sm:$0xff]
    %v109 = vld [vmem:[#allocation2 + $0x1e0] sm:$0xff]
    %v110 = vld [vmem:[#allocation2 + $0x1e8] sm:$0xff]
    %v111 = vld [vmem:[#allocation2 + $0x1f0] sm:$0xff]
    %v112 = vld [vmem:[#allocation2 + $0x1f8] sm:$0xff]
    %v113 = vld [vmem:[%s2] sm:$0xf]
    %v115 = vlaneseq
    %v116 = vshrl.u32 %v115, 7
    %v117 = vsub.s32 0, %v116
    %v118 = vrot.slane %v113, %v117
    %v119 = vlaneseq
    %v120 = vshrl.u32 %v119, 7
    %v121 = vsub.s32 1, %v120
    %v122 = vrot.slane %v113, %v121
    %v123 = vlaneseq
    %v124 = vshrl.u32 %v123, 7
    %v125 = vsub.s32 2, %v124
    %v126 = vrot.slane %v113, %v125
    %v127 = vlaneseq
    %v128 = vshrl.u32 %v127, 7
    %v129 = vsub.s32 3, %v128
    %v130 = vrot.slane %v113, %v129
    %135 = vmatprep.subr.mxu0 %v110
    %136 = vmatpush1.msra.mxu0 %v109
    %137 = vmatprep.subr.mxu0 %v106
    %138 = vmatpush1.msra.mxu0 %v105
    %139 = vmatprep.subr.mxu0 %v102
    %140 = vmatpush1.msra.mxu0 %v101
    %141 = vmatprep.subr.mxu0 %v98
    %142 = vmatpush1.msra.mxu0 %v97
    %143 = vmatprep.subr.mxu0 %v94
    %144 = vmatpush1.msra.mxu0 %v93
    %145 = vmatprep.subr.mxu0 %v90
    %146 = vmatpush1.msra.mxu0 %v89
    %147 = vmatprep.subr.mxu0 %v86
    %148 = vmatpush1.msra.mxu0 %v85
    %149 = vmatprep.subr.mxu0 %v82
    %150 = vmatpush1.msra.mxu0 %v81
    %151 = vmatprep.subr.mxu0 %v78
    %152 = vmatpush1.msra.mxu0 %v77
    %153 = vmatprep.subr.mxu0 %v74
    %154 = vmatpush1.msra.mxu0 %v73
    %155 = vmatprep.subr.mxu0 %v70
    %156 = vmatpush1.msra.mxu0 %v69
    %157 = vmatprep.subr.mxu0 %v66
    %158 = vmatpush1.msra.mxu0 %v65
    %159 = vmatprep.subr.mxu0 %v62
    %160 = vmatpush1.msra.mxu0 %v61
    %161 = vmatprep.subr.mxu0 %v58
    %162 = vmatpush1.msra.mxu0 %v57
    %163 = vmatprep.subr.mxu0 %v54
    %164 = vmatpush1.msra.mxu0 %v53
    %165 = vmatprep.subr.mxu0 %v50
    %166 = vmatpush1.msra.mxu0 %v49
    %167 = vmatprep.subr.mxu0 0.0
    %168 = vmatpush2.msra.mxu0 0.0
    %169 = vmatprep.subr.mxu0 0.0
    %170 = vmatpush2.msra.mxu0 0.0
    %171 = vmatprep.subr.mxu0 0.0
    %172 = vmatpush2.msra.mxu0 0.0
    %173 = vmatprep.subr.mxu0 0.0
    %174 = vmatpush2.msra.mxu0 0.0
    %175 = vmatprep.subr.mxu0 0.0
    %176 = vmatpush2.msra.mxu0 0.0
    %177 = vmatprep.subr.mxu0 0.0
    %178 = vmatpush2.msra.mxu0 0.0
    %179 = vmatprep.subr.mxu0 0.0
    %180 = vmatpush2.msra.mxu0 0.0
    %181 = vmatprep.subr.mxu0 0.0
    %182 = vmatpush2.msra.mxu0 0.0
    %183 = vmatprep.subr.mxu0 0.0
    %184 = vmatpush2.msra.mxu0 0.0
    %185 = vmatprep.subr.mxu0 0.0
    %186 = vmatpush2.msra.mxu0 0.0
    %187 = vmatprep.subr.mxu0 0.0
    %188 = vmatpush2.msra.mxu0 0.0
    %189 = vmatprep.subr.mxu0 0.0
    %190 = vmatpush2.msra.mxu0 0.0
    %191 = vmatprep.subr.mxu0 0.0
    %192 = vmatpush2.msra.mxu0 0.0
    %193 = vmatprep.subr.mxu0 0.0
    %194 = vmatpush2.msra.mxu0 0.0
    %195 = vmatprep.subr.mxu0 0.0
    %196 = vmatpush2.msra.mxu0 0.0
    %197 = vmatprep.subr.mxu0 0.0
    %198 = vmatpush2.msra.mxu0 0.0
    %199 = vmatprep.mubr.f32.mxu0 0.0
    %200 = vmatmul.mubr.f32.gmra.mxu0 %v48
    %v201 = vpop.f32.mrf.mxu0
    %v202 = vadd.f32 %v118, %v201
    %v203 = vpop.f32.mrf.mxu0
    %v204 = vadd.f32 %v122, %v203
    %205 = vdwg.mxu0
    %206 = vmatprep.subr.mxu0 %v112
    %207 = vmatpush1.msra.mxu0 %v111
    %208 = vmatprep.subr.mxu0 %v108
    %209 = vmatpush1.msra.mxu0 %v107
    %210 = vmatprep.subr.mxu0 %v104
    %211 = vmatpush1.msra.mxu0 %v103
    %212 = vmatprep.subr.mxu0 %v100
    %213 = vmatpush1.msra.mxu0 %v99
    %214 = vmatprep.subr.mxu0 %v96
    %215 = vmatpush1.msra.mxu0 %v95
    %216 = vmatprep.subr.mxu0 %v92
    %217 = vmatpush1.msra.mxu0 %v91
    %218 = vmatprep.subr.mxu0 %v88
    %219 = vmatpush1.msra.mxu0 %v87
    %220 = vmatprep.subr.mxu0 %v84
    %221 = vmatpush1.msra.mxu0 %v83
    %222 = vmatprep.subr.mxu0 %v80
    %223 = vmatpush1.msra.mxu0 %v79
    %224 = vmatprep.subr.mxu0 %v76
    %225 = vmatpush1.msra.mxu0 %v75
    %226 = vmatprep.subr.mxu0 %v72
    %227 = vmatpush1.msra.mxu0 %v71
    %228 = vmatprep.subr.mxu0 %v68
    %229 = vmatpush1.msra.mxu0 %v67
    %230 = vmatprep.subr.mxu0 %v64
    %231 = vmatpush1.msra.mxu0 %v63
    %232 = vmatprep.subr.mxu0 %v60
    %233 = vmatpush1.msra.mxu0 %v59
    %234 = vmatprep.subr.mxu0 %v56
    %235 = vmatpush1.msra.mxu0 %v55
    %236 = vmatprep.subr.mxu0 %v52
    %237 = vmatpush1.msra.mxu0 %v51
    %238 = vmatprep.subr.mxu0 0.0
    %239 = vmatpush2.msra.mxu0 0.0
    %240 = vmatprep.subr.mxu0 0.0
    %241 = vmatpush2.msra.mxu0 0.0
    %242 = vmatprep.subr.mxu0 0.0
    %243 = vmatpush2.msra.mxu0 0.0
    %244 = vmatprep.subr.mxu0 0.0
    %245 = vmatpush2.msra.mxu0 0.0
    %246 = vmatprep.subr.mxu0 0.0
    %247 = vmatpush2.msra.mxu0 0.0
    %248 = vmatprep.subr.mxu0 0.0
    %249 = vmatpush2.msra.mxu0 0.0
    %250 = vmatprep.subr.mxu0 0.0
    %251 = vmatpush2.msra.mxu0 0.0
    %252 = vmatprep.subr.mxu0 0.0
    %253 = vmatpush2.msra.mxu0 0.0
    %254 = vmatprep.subr.mxu0 0.0
    %255 = vmatpush2.msra.mxu0 0.0
    %256 = vmatprep.subr.mxu0 0.0
    %257 = vmatpush2.msra.mxu0 0.0
    %258 = vmatprep.subr.mxu0 0.0
    %259 = vmatpush2.msra.mxu0 0.0
    %260 = vmatprep.subr.mxu0 0.0
    %261 = vmatpush2.msra.mxu0 0.0
    %262 = vmatprep.subr.mxu0 0.0
    %263 = vmatpush2.msra.mxu0 0.0
    %264 = vmatprep.subr.mxu0 0.0
    %265 = vmatpush2.msra.mxu0 0.0
    %266 = vmatprep.subr.mxu0 0.0
    %267 = vmatpush2.msra.mxu0 0.0
    %268 = vmatprep.subr.mxu0 0.0
    %269 = vmatpush2.msra.mxu0 0.0
    %270 = vmatprep.mubr.f32.mxu0 0.0
    %271 = vmatmul.mubr.f32.gmra.mxu0 %v48
    %v272 = vpop.f32.mrf.mxu0
    %v273 = vadd.f32 %v126, %v272
    %v274 = vpop.f32.mrf.mxu0
    %v275 = vadd.f32 %v130, %v274
    %276 = vdwg.mxu0
    %v277 = vmax.f32 %v202, 0.0
    %v278 = vmax.f32 %v204, 0.0
    %v279 = vmax.f32 %v273, 0.0
    %v280 = vmax.f32 %v275, 0.0
    %v281 = vld [vmem:[#allocation4] sm:$0xff]
    %v282 = vld [vmem:[#allocation4 + $0x8] sm:$0xff]
    %v283 = vld [vmem:[#allocation4 + $0x10] sm:$0xff]
    %v284 = vld [vmem:[#allocation4 + $0x18] sm:$0xff]
    %v285 = vld [vmem:[#allocation4 + $0x20] sm:$0xff]
    %v286 = vld [vmem:[#allocation4 + $0x28] sm:$0xff]
    %v287 = vld [vmem:[#allocation4 + $0x30] sm:$0xff]
    %v288 = vld [vmem:[#allocation4 + $0x38] sm:$0xff]
    %v289 = vld [vmem:[#allocation4 + $0x40] sm:$0xff]
    %v290 = vld [vmem:[#allocation4 + $0x48] sm:$0xff]
    %v291 = vld [vmem:[#allocation4 + $0x50] sm:$0xff]
    %v292 = vld [vmem:[#allocation4 + $0x58] sm:$0xff]
    %v293 = vld [vmem:[#allocation4 + $0x60] sm:$0xff]
    %v294 = vld [vmem:[#allocation4 + $0x68] sm:$0xff]
    %v295 = vld [vmem:[#allocation4 + $0x70] sm:$0xff]
    %v296 = vld [vmem:[#allocation4 + $0x78] sm:$0xff]
    %v297 = vld [vmem:[#allocation4 + $0x80] sm:$0xff]
    %v298 = vld [vmem:[#allocation4 + $0x88] sm:$0xff]
    %v299 = vld [vmem:[#allocation4 + $0x90] sm:$0xff]
    %v300 = vld [vmem:[#allocation4 + $0x98] sm:$0xff]
    %v301 = vld [vmem:[#allocation4 + $0xa0] sm:$0xff]
    %v302 = vld [vmem:[#allocation4 + $0xa8] sm:$0xff]
    %v303 = vld [vmem:[#allocation4 + $0xb0] sm:$0xff]
    %v304 = vld [vmem:[#allocation4 + $0xb8] sm:$0xff]
    %v305 = vld [vmem:[#allocation4 + $0xc0] sm:$0xff]
    %v306 = vld [vmem:[#allocation4 + $0xc8] sm:$0xff]
    %v307 = vld [vmem:[#allocation4 + $0xd0] sm:$0xff]
    %v308 = vld [vmem:[#allocation4 + $0xd8] sm:$0xff]
    %v309 = vld [vmem:[#allocation4 + $0xe0] sm:$0xff]
    %v310 = vld [vmem:[#allocation4 + $0xe8] sm:$0xff]
    %v311 = vld [vmem:[#allocation4 + $0xf0] sm:$0xff]
    %v312 = vld [vmem:[#allocation4 + $0xf8] sm:$0xff]
    %v313 = vld [vmem:[#allocation4 + $0x100] sm:$0xff]
    %v314 = vld [vmem:[#allocation4 + $0x108] sm:$0xff]
    %v315 = vld [vmem:[#allocation4 + $0x110] sm:$0xff]
    %v316 = vld [vmem:[#allocation4 + $0x118] sm:$0xff]
    %v317 = vld [vmem:[#allocation4 + $0x120] sm:$0xff]
    %v318 = vld [vmem:[#allocation4 + $0x128] sm:$0xff]
    %v319 = vld [vmem:[#allocation4 + $0x130] sm:$0xff]
    %v320 = vld [vmem:[#allocation4 + $0x138] sm:$0xff]
    %v321 = vld [vmem:[#allocation4 + $0x140] sm:$0xff]
    %v322 = vld [vmem:[#allocation4 + $0x148] sm:$0xff]
    %v323 = vld [vmem:[#allocation4 + $0x150] sm:$0xff]
    %v324 = vld [vmem:[#allocation4 + $0x158] sm:$0xff]
    %v325 = vld [vmem:[#allocation4 + $0x160] sm:$0xff]
    %v326 = vld [vmem:[#allocation4 + $0x168] sm:$0xff]
    %v327 = vld [vmem:[#allocation4 + $0x170] sm:$0xff]
    %v328 = vld [vmem:[#allocation4 + $0x178] sm:$0xff]
    %v329 = vld [vmem:[#allocation4 + $0x180] sm:$0xff]
    %v330 = vld [vmem:[#allocation4 + $0x188] sm:$0xff]
    %v331 = vld [vmem:[#allocation4 + $0x190] sm:$0xff]
    %v332 = vld [vmem:[#allocation4 + $0x198] sm:$0xff]
    %v333 = vld [vmem:[#allocation4 + $0x1a0] sm:$0xff]
    %v334 = vld [vmem:[#allocation4 + $0x1a8] sm:$0xff]
    %v335 = vld [vmem:[#allocation4 + $0x1b0] sm:$0xff]
    %v336 = vld [vmem:[#allocation4 + $0x1b8] sm:$0xff]
    %v337 = vld [vmem:[#allocation4 + $0x1c0] sm:$0xff]
    %v338 = vld [vmem:[#allocation4 + $0x1c8] sm:$0xff]
    %v339 = vld [vmem:[#allocation4 + $0x1d0] sm:$0xff]
    %v340 = vld [vmem:[#allocation4 + $0x1d8] sm:$0xff]
    %v341 = vld [vmem:[#allocation4 + $0x1e0] sm:$0xff]
    %v342 = vld [vmem:[#allocation4 + $0x1e8] sm:$0xff]
    %v343 = vld [vmem:[#allocation4 + $0x1f0] sm:$0xff]
    %v344 = vld [vmem:[#allocation4 + $0x1f8] sm:$0xff]
    %v345 = vld [vmem:[%s4] sm:$0x1]
    %v347 = vlaneseq
    %v348 = vshrl.u32 %v347, 7
    %v349 = vsub.s32 0, %v348
    %v350 = vrot.slane %v345, %v349
    %352 = vmatprep.subr.mxu0 0.0
    %353 = vmatpush1.msra.mxu0 %v296
    %354 = vmatprep.subr.mxu0 0.0
    %355 = vmatpush1.msra.mxu0 %v295
    %356 = vmatprep.subr.mxu0 0.0
    %357 = vmatpush1.msra.mxu0 %v294
    %358 = vmatprep.subr.mxu0 0.0
    %359 = vmatpush1.msra.mxu0 %v293
    %360 = vmatprep.subr.mxu0 0.0
    %361 = vmatpush1.msra.mxu0 %v292
    %362 = vmatprep.subr.mxu0 0.0
    %363 = vmatpush1.msra.mxu0 %v291
    %364 = vmatprep.subr.mxu0 0.0
    %365 = vmatpush1.msra.mxu0 %v290
    %366 = vmatprep.subr.mxu0 0.0
    %367 = vmatpush1.msra.mxu0 %v289
    %368 = vmatprep.subr.mxu0 0.0
    %369 = vmatpush1.msra.mxu0 %v288
    %370 = vmatprep.subr.mxu0 0.0
    %371 = vmatpush1.msra.mxu0 %v287
    %372 = vmatprep.subr.mxu0 0.0
    %373 = vmatpush1.msra.mxu0 %v286
    %374 = vmatprep.subr.mxu0 0.0
    %375 = vmatpush1.msra.mxu0 %v285
    %376 = vmatprep.subr.mxu0 0.0
    %377 = vmatpush1.msra.mxu0 %v284
    %378 = vmatprep.subr.mxu0 0.0
    %379 = vmatpush1.msra.mxu0 %v283
    %380 = vmatprep.subr.mxu0 0.0
    %381 = vmatpush1.msra.mxu0 %v282
    %382 = vmatprep.subr.mxu0 0.0
    %383 = vmatpush1.msra.mxu0 %v281
    %384 = vmatprep.subr.mxu0 0.0
    %385 = vmatpush2.msra.mxu0 %v312
    %386 = vmatprep.subr.mxu0 0.0
    %387 = vmatpush2.msra.mxu0 %v311
    %388 = vmatprep.subr.mxu0 0.0
    %389 = vmatpush2.msra.mxu0 %v310
    %390 = vmatprep.subr.mxu0 0.0
    %391 = vmatpush2.msra.mxu0 %v309
    %392 = vmatprep.subr.mxu0 0.0
    %393 = vmatpush2.msra.mxu0 %v308
    %394 = vmatprep.subr.mxu0 0.0
    %395 = vmatpush2.msra.mxu0 %v307
    %396 = vmatprep.subr.mxu0 0.0
    %397 = vmatpush2.msra.mxu0 %v306
    %398 = vmatprep.subr.mxu0 0.0
    %399 = vmatpush2.msra.mxu0 %v305
    %400 = vmatprep.subr.mxu0 0.0
    %401 = vmatpush2.msra.mxu0 %v304
    %402 = vmatprep.subr.mxu0 0.0
    %403 = vmatpush2.msra.mxu0 %v303
    %404 = vmatprep.subr.mxu0 0.0
    %405 = vmatpush2.msra.mxu0 %v302
    %406 = vmatprep.subr.mxu0 0.0
    %407 = vmatpush2.msra.mxu0 %v301
    %408 = vmatprep.subr.mxu0 0.0
    %409 = vmatpush2.msra.mxu0 %v300
    %410 = vmatprep.subr.mxu0 0.0
    %411 = vmatpush2.msra.mxu0 %v299
    %412 = vmatprep.subr.mxu0 0.0
    %413 = vmatpush2.msra.mxu0 %v298
    %414 = vmatprep.subr.mxu0 0.0
    %415 = vmatpush2.msra.mxu0 %v297
    %416 = vmatprep.mubr.f32.mxu0 %v278
    %417 = vmatmul.mubr.f32.gmra.mxu0 %v277
    %v418 = vpop.f32.mrf.mxu0
    %v419 = vadd.f32 %v350, %v418
    %v420 = vpop.f32.mrf.mxu0
    %421 = vdwg.mxu0
    %422 = vmatprep.subr.mxu0 0.0
    %423 = vmatpush1.msra.mxu0 %v328
    %424 = vmatprep.subr.mxu0 0.0
    %425 = vmatpush1.msra.mxu0 %v327
    %426 = vmatprep.subr.mxu0 0.0
    %427 = vmatpush1.msra.mxu0 %v326
    %428 = vmatprep.subr.mxu0 0.0
    %429 = vmatpush1.msra.mxu0 %v325
    %430 = vmatprep.subr.mxu0 0.0
    %431 = vmatpush1.msra.mxu0 %v324
    %432 = vmatprep.subr.mxu0 0.0
    %433 = vmatpush1.msra.mxu0 %v323
    %434 = vmatprep.subr.mxu0 0.0
    %435 = vmatpush1.msra.mxu0 %v322
    %436 = vmatprep.subr.mxu0 0.0
    %437 = vmatpush1.msra.mxu0 %v321
    %438 = vmatprep.subr.mxu0 0.0
    %439 = vmatpush1.msra.mxu0 %v320
    %440 = vmatprep.subr.mxu0 0.0
    %441 = vmatpush1.msra.mxu0 %v319
    %442 = vmatprep.subr.mxu0 0.0
    %443 = vmatpush1.msra.mxu0 %v318
    %444 = vmatprep.subr.mxu0 0.0
    %445 = vmatpush1.msra.mxu0 %v317
    %446 = vmatprep.subr.mxu0 0.0
    %447 = vmatpush1.msra.mxu0 %v316
    %448 = vmatprep.subr.mxu0 0.0
    %449 = vmatpush1.msra.mxu0 %v315
    %450 = vmatprep.subr.mxu0 0.0
    %451 = vmatpush1.msra.mxu0 %v314
    %452 = vmatprep.subr.mxu0 0.0
    %453 = vmatpush1.msra.mxu0 %v313
    %454 = vmatprep.subr.mxu0 0.0
    %455 = vmatpush2.msra.mxu0 %v344
    %456 = vmatprep.subr.mxu0 0.0
    %457 = vmatpush2.msra.mxu0 %v343
    %458 = vmatprep.subr.mxu0 0.0
    %459 = vmatpush2.msra.mxu0 %v342
    %460 = vmatprep.subr.mxu0 0.0
    %461 = vmatpush2.msra.mxu0 %v341
    %462 = vmatprep.subr.mxu0 0.0
    %463 = vmatpush2.msra.mxu0 %v340
    %464 = vmatprep.subr.mxu0 0.0
    %465 = vmatpush2.msra.mxu0 %v339
    %466 = vmatprep.subr.mxu0 0.0
    %467 = vmatpush2.msra.mxu0 %v338
    %468 = vmatprep.subr.mxu0 0.0
    %469 = vmatpush2.msra.mxu0 %v337
    %470 = vmatprep.subr.mxu0 0.0
    %471 = vmatpush2.msra.mxu0 %v336
    %472 = vmatprep.subr.mxu0 0.0
    %473 = vmatpush2.msra.mxu0 %v335
    %474 = vmatprep.subr.mxu0 0.0
    %475 = vmatpush2.msra.mxu0 %v334
    %476 = vmatprep.subr.mxu0 0.0
    %477 = vmatpush2.msra.mxu0 %v333
    %478 = vmatprep.subr.mxu0 0.0
    %479 = vmatpush2.msra.mxu0 %v332
    %480 = vmatprep.subr.mxu0 0.0
    %481 = vmatpush2.msra.mxu0 %v331
    %482 = vmatprep.subr.mxu0 0.0
    %483 = vmatpush2.msra.mxu0 %v330
    %484 = vmatprep.subr.mxu0 0.0
    %485 = vmatpush2.msra.mxu0 %v329
    %486 = vmatprep.mubr.f32.mxu0 %v280
    %487 = vmatmul.mubr.f32.gmra.mxu0 %v279
    %v488 = vpop.f32.mrf.mxu0
    %v489 = vadd.f32 %v419, %v488
    %v490 = vpop.f32.mrf.mxu0
    %491 = vdwg.mxu0
    %492 = vst [vmem:[%s5] sm:$0xff] %v489
    // Predicated region
    $region30: #{feed_forward.1} parent=1 // pred_check
      _
    $region31: #{feed_forward.1} parent=1 // pred_check_branch
      %494 = sbr.rel (0) target = $region33
    $region32: #{feed_forward.1} parent=1 // pred_region
      _
    $region33: #{feed_forward.1} parent=1 // pred_fallthru
      _
    // Predicated region
    $region34: #{feed_forward.1} parent=1 // pred_check
      _
    $region35: #{feed_forward.1} parent=1 // pred_check_branch
      %496 = sbr.rel (0) target = $region37
    $region36: #{feed_forward.1} parent=1 // pred_region
      _
    $region37: #{feed_forward.1} parent=1 // pred_fallthru
      _
    %497 = vsyncpa [#allocation3], 1
    %498 = vsyncpa [#allocation5], 1

</llo_original>
